<compile_context>
chip_gen: v7x
topology: tpu7x:2x2x1
jax: 0.10.0
libtpu: 0.0.40
codegen_flags: <defaults>
</compile_context>

<pallas_src>
import functools

import jax
import jax.numpy as jnp
from jax.experimental import pallas as pl
from jax.experimental.pallas import tpu as pltpu

LANE = 128
N_LAYERS = 5


def _mlp_kernel(x_ref, w1_ref, wm_ref, w5_ref, b_ref, o_ref):
    """5-layer MLP (Linear+ReLU x4, Linear+Sigmoid) for one batch tile.

    Matmuls: bf16 operands + f32 accumulation (native MXU rate).
    Elementwise (bias add, ReLU, sigmoid): f32 on VPU/EUP.
    Output: lane-dense (1, TB) row; only the real fc5 lane gets bias+sigmoid.
    """
    h = x_ref[...].astype(jnp.bfloat16)                                # (TB, NF)

    # fc1: contract the real NF input lanes against [NF, 128] weights.
    z = jnp.dot(h, w1_ref[...], preferred_element_type=jnp.float32)   # (TB, 128)
    z = jnp.maximum(z + b_ref[0], 0.0)
    h = z.astype(jnp.bfloat16)

    # fc2..fc4
    for i in range(3):
        z = jnp.dot(h, wm_ref[i], preferred_element_type=jnp.float32)
        z = jnp.maximum(z + b_ref[i + 1], 0.0)
        h = z.astype(jnp.bfloat16)

    # fc5 has a single real output unit: compute it as a rhs-transposed MXU
    # contraction (the q@k^T pattern) so the result is already a lane-dense
    # (8, TB) block whose row 0 is the real output row -- no (TB,128) slab,
    # no masked narrow stores.
    y8 = jax.lax.dot_general(
        w5_ref[...], h,
        dimension_numbers=(((1,), (1,)), ((), ())),
        preferred_element_type=jnp.float32)                            # (8, TB)

    b5 = b_ref[4][:, 0:1]                                              # (1, 1)
    y = jax.nn.sigmoid(y8[0:1, :] + b5)                                # (1, TB)
    o_ref[0] = y.astype(o_ref.dtype)


def init_params(key, nfeatures, nhidden, dtype=jnp.float32):
    """Deterministic PyTorch-style (uniform +-1/sqrt(fan_in)) init.

    Weights are stored as [in, out]; biases as [1, out].
    """
    dims = [(nfeatures, nhidden)] + [(nhidden, nhidden)] * 3 + [(nhidden, 1)]
    params = []
    for i, (fan_in, fan_out) in enumerate(dims):
        kw, kb = jax.random.split(jax.random.fold_in(key, i))
        bound = 1.0 / (fan_in ** 0.5)
        w = jax.random.uniform(kw, (fan_in, fan_out), dtype, -bound, bound)
        b = jax.random.uniform(kb, (1, fan_out), dtype, -bound, bound)
        params.append((w, b))
    return params


def pack_params(params, pad=LANE):
    """Pack the 5 layers for the kernel.

    Returns (w1 [NF, pad] bf16, wm [3, pad, pad] bf16, w5 [8, pad] bf16,
             b [5, 1, pad] f32).  Zero padding keeps padded lanes exactly zero
    through every ReLU.  Biases stay f32 for elementwise precision.
    """
    (w1, b1), (w2, b2), (w3, b3), (w4, b4), (w5, b5) = params
    nf, nh = w1.shape
    assert nh <= pad and nf <= pad, "layer wider than lane padding"

    w1_p = jnp.zeros((nf, pad), jnp.float32).at[:, :nh].set(w1)
    wm_p = jnp.stack([
        jnp.zeros((pad, pad), jnp.float32).at[:nh, :nh].set(w)
        for w in (w2, w3, w4)])
    # fc5 weight as a row block (row 0 = W5^T, i.e. PyTorch's [1, NH] layout).
    w5_p = jnp.zeros((8, pad), jnp.float32).at[0, :nh].set(w5[:, 0])

    b_p = jnp.zeros((N_LAYERS, 1, pad), jnp.float32)
    for i, b in enumerate((b1, b2, b3, b4)):
        b_p = b_p.at[i, :, :nh].set(b.reshape(1, -1))
    b_p = b_p.at[4, 0, 0].set(b5.reshape(())[()])

    return (w1_p.astype(jnp.bfloat16), wm_p.astype(jnp.bfloat16),
            w5_p.astype(jnp.bfloat16), b_p)


def _round_up(n, m):
    return ((n + m - 1) // m) * m


def _choose_tiling(batch, tb_max=2048):
    """Adaptive batch tiling: big tiles (amortize ~0.35us/step overhead),
    minimal batch padding, and >=2 (even) tiles for large B so v7x's two
    TensorCores both get work under the 'parallel' grid axis."""
    num_tiles = -(-batch // tb_max)
    if batch > 8 and num_tiles == 1:
        num_tiles = 2
    if num_tiles > 1 and num_tiles % 2:
        num_tiles += 1
    tb = max(8, _round_up(-(-batch // num_tiles), 8))
    return tb, num_tiles


@functools.partial(jax.jit, static_argnums=(2,))
def nnmodel_forward(x, packed, nfeatures):
    """Equivalent of NNModel.forward: view(-1, NFEATURES) -> MLP -> view(-1)."""
    if x.size % nfeatures:
        raise ValueError(
            f"x has {x.size} elements, not divisible by NFEATURES={nfeatures}")
    w1, wm, w5, b = packed
    x2d = x.reshape(-1, nfeatures).astype(jnp.float32)
    B = x2d.shape[0]

    TB, num_tiles = _choose_tiling(B)
    B_pad = TB * num_tiles
    if B_pad != B:  # pad batch rows only -- no 128-lane feature padding
        x2d = jnp.pad(x2d, ((0, B_pad - B), (0, 0)))

    out = pl.pallas_call(
        _mlp_kernel,
        out_shape=jax.ShapeDtypeStruct((num_tiles, 1, TB), jnp.float32),
        grid_spec=pltpu.PrefetchScalarGridSpec(
            num_scalar_prefetch=0,
            grid=(num_tiles,),
            in_specs=[
                # only x is pipelined over the grid; weights/biases are
                # constant-index (VMEM-resident across steps).
                pl.BlockSpec((TB, nfeatures), lambda i: (i, 0)),
                pl.BlockSpec(w1.shape, lambda i: (0, 0)),
                pl.BlockSpec(wm.shape, lambda i: (0, 0, 0)),
                pl.BlockSpec(w5.shape, lambda i: (0, 0)),
                pl.BlockSpec(b.shape, lambda i: (0, 0, 0)),
            ],
            out_specs=pl.BlockSpec((1, 1, TB), lambda i: (i, 0, 0)),
        ),
        compiler_params=pltpu.CompilerParams(
            dimension_semantics=("parallel",)),
    )(x2d, w1, wm, w5, b)

    # (num_tiles, 1, TB) -> flat (B_pad,) -> drop batch padding.
    return out.reshape(-1)[:B]


if __name__ == "__main__":
    NFEATURES = 32
    NHIDDEN = 32

    key = jax.random.PRNGKey(0)
    k_params, k_x, k_x2 = jax.random.split(key, 3)

    params = init_params(k_params, NFEATURES, NHIDDEN)
    packed = pack_params(params)

    # Reference A: same bf16-operand / f32-accumulate math in plain JAX.
    def ref_bf16(x, params):
        h = x.reshape(-1, NFEATURES).astype(jnp.float32)
        for i, (w, b) in enumerate(params):
            h = jnp.dot(h.astype(jnp.bfloat16), w.astype(jnp.bfloat16),
                        preferred_element_type=jnp.float32) + b
            if i < len(params) - 1:
                h = jnp.maximum(h, 0.0)
        return jax.nn.sigmoid(h).reshape(-1)

    # Reference B: full-f32 forward (exactly the PyTorch module's math).
    def ref_f32(x, params):
        h = x.reshape(-1, NFEATURES)
        for i, (w, b) in enumerate(params):
            h = h @ w + b
            if i < len(params) - 1:
                h = jnp.maximum(h, 0.0)
        return jax.nn.sigmoid(h).reshape(-1)

    # --- small case: any leading shape is flattened by .view(-1, NFEATURES) ---
    x = jax.random.normal(k_x, (2, 4, NFEATURES), dtype=jnp.float32)
    y = nnmodel_forward(x, packed, NFEATURES)
    jax.block_until_ready(y)
    assert y.shape == (8,), y.shape
    assert jnp.allclose(y, ref_bf16(x, params), atol=1e-3, rtol=1e-3), \
        float(jnp.max(jnp.abs(y - ref_bf16(x, params))))
    assert jnp.allclose(y, ref_f32(x, params), atol=3e-2, rtol=3e-2), \
        float(jnp.max(jnp.abs(y - ref_f32(x, params))))

    # --- multi-tile case (exercises batch padding + 2 parallel grid steps) ---
    x2 = jax.random.normal(k_x2, (300, NFEATURES), dtype=jnp.float32)
    y2 = nnmodel_forward(x2, packed, NFEATURES)
    jax.block_until_ready(y2)
    assert y2.shape == (300,), y2.shape
    assert jnp.allclose(y2, ref_bf16(x2, params), atol=1e-3, rtol=1e-3), \
        float(jnp.max(jnp.abs(y2 - ref_bf16(x2, params))))
    assert jnp.allclose(y2, ref_f32(x2, params), atol=3e-2, rtol=3e-2), \
        float(jnp.max(jnp.abs(y2 - ref_f32(x2, params))))

    print("KERNEL_OK")
</pallas_src>

<mosaic_0001>
module attributes {stable_mosaic.version = 11 : i64} {
  func.func @_mlp_kernel(%arg0: i32, %arg1: memref<8x32xf32, #tpu.memory_space<vmem>>, %arg2: memref<32x128xbf16, #tpu.memory_space<vmem>>, %arg3: memref<3x128x128xbf16, #tpu.memory_space<vmem>>, %arg4: memref<8x128xbf16, #tpu.memory_space<vmem>>, %arg5: memref<5x1x128xf32, #tpu.memory_space<vmem>>, %arg6: memref<1x1x8xf32, #tpu.memory_space<vmem>>) attributes {dimension_semantics = [#tpu.dimension_semantics<parallel>], iteration_bounds = array<i64: 1>, scalar_prefetch = 0 : i64, scratch_operands = 0 : i64, tpu.core_type = #tpu.core_type<tc>, window_params = [{transform_indices = @transform_0, window_bounds = array<i64: 8, 32>}, {pipeline_mode = #tpu.pipeline_mode<synchronous>, transform_indices = @transform_1, window_bounds = array<i64: 32, 128>}, {pipeline_mode = #tpu.pipeline_mode<synchronous>, transform_indices = @transform_2, window_bounds = array<i64: 3, 128, 128>}, {pipeline_mode = #tpu.pipeline_mode<synchronous>, transform_indices = @transform_3, window_bounds = array<i64: 8, 128>}, {pipeline_mode = #tpu.pipeline_mode<synchronous>, transform_indices = @transform_4, window_bounds = array<i64: 5, 1, 128>}, {transform_indices = @transform_5, window_bounds = array<i64: 1, 1, 8>}]} {
    %c0 = arith.constant 0 : index
    %c0_0 = arith.constant 0 : index
    %0 = vector.load %arg1[%c0, %c0_0] : memref<8x32xf32, #tpu.memory_space<vmem>>, vector<8x32xf32>
    %1 = arith.truncf %0 : vector<8x32xf32> to vector<8x32xbf16>
    %c0_1 = arith.constant 0 : index
    %c0_2 = arith.constant 0 : index
    %2 = vector.load %arg2[%c0_1, %c0_2] : memref<32x128xbf16, #tpu.memory_space<vmem>>, vector<32x128xbf16>
    %cst = arith.constant dense<0.000000e+00> : vector<8x128xf32>
    %3 = tpu.matmul %1, %2, %cst {dimension_numbers = #tpu.dot_dimension_numbers<[1], [0], [0], [1], [0, 0, 1, 1], [], []>} : vector<8x32xbf16>, vector<32x128xbf16>, vector<8x128xf32> -> vector<8x128xf32>
    %c0_3 = arith.constant 0 : index
    %c0_4 = arith.constant 0 : index
    %c0_5 = arith.constant 0 : index
    %4 = vector.load %arg5[%c0_3, %c0_4, %c0_5] : memref<5x1x128xf32, #tpu.memory_space<vmem>>, vector<1x1x128xf32>
    %5 = vector.shape_cast %4 : vector<1x1x128xf32> to vector<1x128xf32>
    %6 = vector.broadcast %5 : vector<1x128xf32> to vector<8x128xf32>
    %7 = arith.addf %3, %6 : vector<8x128xf32>
    %cst_6 = arith.constant 0.000000e+00 : f32
    %8 = vector.broadcast %cst_6 : f32 to vector<8x128xf32>
    %9 = arith.maximumf %7, %8 : vector<8x128xf32>
    %10 = arith.truncf %9 : vector<8x128xf32> to vector<8x128xbf16>
    %c0_7 = arith.constant 0 : index
    %c0_8 = arith.constant 0 : index
    %c0_9 = arith.constant 0 : index
    %11 = vector.load %arg3[%c0_7, %c0_8, %c0_9] : memref<3x128x128xbf16, #tpu.memory_space<vmem>>, vector<1x128x128xbf16>
    %12 = vector.shape_cast %11 : vector<1x128x128xbf16> to vector<128x128xbf16>
    %cst_10 = arith.constant dense<0.000000e+00> : vector<8x128xf32>
    %13 = tpu.matmul %10, %12, %cst_10 {dimension_numbers = #tpu.dot_dimension_numbers<[1], [0], [0], [1], [0, 0, 1, 1], [], []>} : vector<8x128xbf16>, vector<128x128xbf16>, vector<8x128xf32> -> vector<8x128xf32>
    %c1 = arith.constant 1 : index
    %c0_11 = arith.constant 0 : index
    %c0_12 = arith.constant 0 : index
    %14 = vector.load %arg5[%c1, %c0_11, %c0_12] : memref<5x1x128xf32, #tpu.memory_space<vmem>>, vector<1x1x128xf32>
    %15 = vector.shape_cast %14 : vector<1x1x128xf32> to vector<1x128xf32>
    %16 = vector.broadcast %15 : vector<1x128xf32> to vector<8x128xf32>
    %17 = arith.addf %13, %16 : vector<8x128xf32>
    %cst_13 = arith.constant 0.000000e+00 : f32
    %18 = vector.broadcast %cst_13 : f32 to vector<8x128xf32>
    %19 = arith.maximumf %17, %18 : vector<8x128xf32>
    %20 = arith.truncf %19 : vector<8x128xf32> to vector<8x128xbf16>
    %c1_14 = arith.constant 1 : index
    %c0_15 = arith.constant 0 : index
    %c0_16 = arith.constant 0 : index
    %21 = vector.load %arg3[%c1_14, %c0_15, %c0_16] : memref<3x128x128xbf16, #tpu.memory_space<vmem>>, vector<1x128x128xbf16>
    %22 = vector.shape_cast %21 : vector<1x128x128xbf16> to vector<128x128xbf16>
    %cst_17 = arith.constant dense<0.000000e+00> : vector<8x128xf32>
    %23 = tpu.matmul %20, %22, %cst_17 {dimension_numbers = #tpu.dot_dimension_numbers<[1], [0], [0], [1], [0, 0, 1, 1], [], []>} : vector<8x128xbf16>, vector<128x128xbf16>, vector<8x128xf32> -> vector<8x128xf32>
    %c2 = arith.constant 2 : index
    %c0_18 = arith.constant 0 : index
    %c0_19 = arith.constant 0 : index
    %24 = vector.load %arg5[%c2, %c0_18, %c0_19] : memref<5x1x128xf32, #tpu.memory_space<vmem>>, vector<1x1x128xf32>
    %25 = vector.shape_cast %24 : vector<1x1x128xf32> to vector<1x128xf32>
    %26 = vector.broadcast %25 : vector<1x128xf32> to vector<8x128xf32>
    %27 = arith.addf %23, %26 : vector<8x128xf32>
    %cst_20 = arith.constant 0.000000e+00 : f32
    %28 = vector.broadcast %cst_20 : f32 to vector<8x128xf32>
    %29 = arith.maximumf %27, %28 : vector<8x128xf32>
    %30 = arith.truncf %29 : vector<8x128xf32> to vector<8x128xbf16>
    %c2_21 = arith.constant 2 : index
    %c0_22 = arith.constant 0 : index
    %c0_23 = arith.constant 0 : index
    %31 = vector.load %arg3[%c2_21, %c0_22, %c0_23] : memref<3x128x128xbf16, #tpu.memory_space<vmem>>, vector<1x128x128xbf16>
    %32 = vector.shape_cast %31 : vector<1x128x128xbf16> to vector<128x128xbf16>
    %cst_24 = arith.constant dense<0.000000e+00> : vector<8x128xf32>
    %33 = tpu.matmul %30, %32, %cst_24 {dimension_numbers = #tpu.dot_dimension_numbers<[1], [0], [0], [1], [0, 0, 1, 1], [], []>} : vector<8x128xbf16>, vector<128x128xbf16>, vector<8x128xf32> -> vector<8x128xf32>
    %c3 = arith.constant 3 : index
    %c0_25 = arith.constant 0 : index
    %c0_26 = arith.constant 0 : index
    %34 = vector.load %arg5[%c3, %c0_25, %c0_26] : memref<5x1x128xf32, #tpu.memory_space<vmem>>, vector<1x1x128xf32>
    %35 = vector.shape_cast %34 : vector<1x1x128xf32> to vector<1x128xf32>
    %36 = vector.broadcast %35 : vector<1x128xf32> to vector<8x128xf32>
    %37 = arith.addf %33, %36 : vector<8x128xf32>
    %cst_27 = arith.constant 0.000000e+00 : f32
    %38 = vector.broadcast %cst_27 : f32 to vector<8x128xf32>
    %39 = arith.maximumf %37, %38 : vector<8x128xf32>
    %40 = arith.truncf %39 : vector<8x128xf32> to vector<8x128xbf16>
    %c0_28 = arith.constant 0 : index
    %c0_29 = arith.constant 0 : index
    %41 = vector.load %arg4[%c0_28, %c0_29] : memref<8x128xbf16, #tpu.memory_space<vmem>>, vector<8x128xbf16>
    %cst_30 = arith.constant dense<0.000000e+00> : vector<8x8xf32>
    %42 = tpu.matmul %41, %40, %cst_30 {dimension_numbers = #tpu.dot_dimension_numbers<[1], [1], [0], [0], [0, 0, 1, 0], [], []>} : vector<8x128xbf16>, vector<8x128xbf16>, vector<8x8xf32> -> vector<8x8xf32>
    %c4 = arith.constant 4 : index
    %c0_31 = arith.constant 0 : index
    %c0_32 = arith.constant 0 : index
    %43 = vector.load %arg5[%c4, %c0_31, %c0_32] : memref<5x1x128xf32, #tpu.memory_space<vmem>>, vector<1x1x128xf32>
    %44 = vector.shape_cast %43 : vector<1x1x128xf32> to vector<1x128xf32>
    %45 = vector.extract_strided_slice %44 {offsets = [0, 0], sizes = [1, 1], strides = [1, 1]} : vector<1x128xf32> to vector<1x1xf32>
    %46 = vector.extract_strided_slice %42 {offsets = [0, 0], sizes = [1, 8], strides = [1, 1]} : vector<8x8xf32> to vector<1x8xf32>
    %47 = vector.broadcast %45 : vector<1x1xf32> to vector<1x8xf32>
    %48 = arith.addf %46, %47 : vector<1x8xf32>
    %49 = arith.negf %48 : vector<1x8xf32>
    %50 = math.exp %49 : vector<1x8xf32>
    %cst_33 = arith.constant 1.000000e+00 : f32
    %51 = vector.broadcast %cst_33 : f32 to vector<1x8xf32>
    %52 = arith.addf %51, %50 : vector<1x8xf32>
    %53 = arith.divf %51, %52 : vector<1x8xf32>
    %c0_34 = arith.constant 0 : index
    %c0_35 = arith.constant 0 : index
    %c0_36 = arith.constant 0 : index
    %54 = vector.load %arg6[%c0_34, %c0_35, %c0_36] : memref<1x1x8xf32, #tpu.memory_space<vmem>>, vector<1x1x8xf32>
    %55 = vector.shape_cast %54 : vector<1x1x8xf32> to vector<1x8xf32>
    %56 = vector.shape_cast %53 : vector<1x8xf32> to vector<1x1x8xf32>
    tpu.vector_store %arg6[%c0_34, %c0_35, %c0_36], %56 {strides = array<i32>} : memref<1x1x8xf32, #tpu.memory_space<vmem>>, vector<1x1x8xf32>,
    return
  }
  func.func @transform_0(%arg0: i32) -> (i32, i32) {
    %c0_i32 = arith.constant 0 : i32
    %c0_i32_0 = arith.constant 0 : i32
    return %arg0, %c0_i32 : i32, i32
  }
  func.func @transform_1(%arg0: i32) -> (i32, i32) {
    %c0_i32 = arith.constant 0 : i32
    %c0_i32_0 = arith.constant 0 : i32
    %c0_i32_1 = arith.constant 0 : i32
    return %c0_i32, %c0_i32_0 : i32, i32
  }
  func.func @transform_2(%arg0: i32) -> (i32, i32, i32) {
    %c0_i32 = arith.constant 0 : i32
    %c0_i32_0 = arith.constant 0 : i32
    %c0_i32_1 = arith.constant 0 : i32
    %c0_i32_2 = arith.constant 0 : i32
    return %c0_i32, %c0_i32_0, %c0_i32_1 : i32, i32, i32
  }
  func.func @transform_3(%arg0: i32) -> (i32, i32) {
    %c0_i32 = arith.constant 0 : i32
    %c0_i32_0 = arith.constant 0 : i32
    %c0_i32_1 = arith.constant 0 : i32
    return %c0_i32, %c0_i32_0 : i32, i32
  }
  func.func @transform_4(%arg0: i32) -> (i32, i32, i32) {
    %c0_i32 = arith.constant 0 : i32
    %c0_i32_0 = arith.constant 0 : i32
    %c0_i32_1 = arith.constant 0 : i32
    %c0_i32_2 = arith.constant 0 : i32
    return %c0_i32, %c0_i32_0, %c0_i32_1 : i32, i32, i32
  }
  func.func @transform_5(%arg0: i32) -> (i32, i32, i32) {
    %c0_i32 = arith.constant 0 : i32
    %c0_i32_0 = arith.constant 0 : i32
    %c0_i32_1 = arith.constant 0 : i32
    return %arg0, %c0_i32, %c0_i32_0 : i32, i32, i32
  }
}

</mosaic_0001>

<llo_original>
// kernel: nnmodel_forward.1
$region0: #{nnmodel_forward.1}
  #allocation0 [shape = 'u32[]', space=smem, size = 0x4, offset = 0x4, fixed_abs, tag = 'smem constant byte address 0x4 - core index']
  #allocation1 [shape = 'u32[144,128]{1,0:T(1,128)}', space=vmem, size = 0x12000, scoped, tag = 'internal scratch']
  %s0 = inlined_call_operand.hbm [shape: f32[8,32], index: 0, kind: input, shape index: {}]
  %s1 = inlined_call_operand.hbm [shape: bf16[32,128], index: 1, kind: input, shape index: {}]
  %s2 = inlined_call_operand.hbm [shape: bf16[3,128,128], index: 2, kind: input, shape index: {}]
  %s3 = inlined_call_operand.vmem [shape: bf16[8,128], index: 3, kind: input, shape index: {}]
  %s4 = inlined_call_operand.vmem [shape: f32[5,1,128], index: 4, kind: input, shape index: {}]
  %s5 = inlined_call_operand.hbm [shape: f32[1,1,8], index: 5, kind: output, shape index: {}]
  %s6 = sld [smem:[#allocation0]]
  $region42: #{nnmodel_forward.1} parent=0
    _
  %s8 = ssub.s32 1, %s6
  %s9 = scalar_select 0, %s8, %s6
  $region1: #{nnmodel_forward.1} parent=0
    #allocation2 [shape = 'u8[4096]{0}', space=vmem, size = 0x1000, scoped, tag = 'input window, operand 0, single buffered']
    #allocation3 [shape = 's32[1]{0}', space=sflag, size = 0x4, scoped, tag = 'scoped memory for nnmodel_forward.1']
    #allocation4 [shape = 's32[1]{0}', space=sflag, size = 0x4, scoped, tag = 'scoped memory for nnmodel_forward.1']
    #allocation5 [shape = 'u8[8192]{0}', space=vmem, size = 0x2000, scoped, tag = 'input window, operand 1, single buffered']
    #allocation6 [shape = 's32[1]{0}', space=sflag, size = 0x4, scoped, tag = 'scoped memory for nnmodel_forward.1']
    #allocation7 [shape = 'u8[98304]{0}', space=vmem, size = 0x18000, scoped, tag = 'input window, operand 2, single buffered']
    #allocation8 [shape = 'u8[512]{0}', space=vmem, size = 0x400, scoped, tag = 'output window, operand 0, single buffered']
    %10 = vsyncpa [#allocation3], 0
    %11 = vsyncpa [#allocation6], 0
    %12 = vsyncpa [#allocation4], 0
    // Predicated region
    $region2: #{nnmodel_forward.1} parent=1 // pred_check
      _
    $region3: #{nnmodel_forward.1} parent=1 // pred_check_branch
      %14 = sbr.rel (0) target = $region5
    $region4: #{nnmodel_forward.1} parent=1 // pred_region
      %s16 = ssub.s32 128, 128
      %17 = vsyncadd [#allocation3], %s16
      %s19 = sshll.u32 [#allocation2], 4
      %s20 = int_to_ptr.vmem [resolvable:$true] %s19
      %22 = dma.hbm_to_vmem [thread:$0]  %s0, 128, %s20, [#allocation3]
    $region5: #{nnmodel_forward.1} parent=1 // pred_fallthru
      _
    // Predicated region
    $region6: #{nnmodel_forward.1} parent=1 // pred_check
      _
    $region7: #{nnmodel_forward.1} parent=1 // pred_check_branch
      %24 = sbr.rel (0) target = $region9
    $region8: #{nnmodel_forward.1} parent=1 // pred_region
      %s26 = ssub.s32 256, 256
      %27 = vsyncadd [#allocation6], %s26
      %s28 = sshll.u32 [#allocation5], 4
      %s29 = int_to_ptr.vmem [resolvable:$true] %s28
      %34 = dma.hbm_to_vmem [thread:$0]  %s1, 256, %s29, [#allocation6], 64, 64, 4
    $region9: #{nnmodel_forward.1} parent=1 // pred_fallthru
      _
    // Predicated region
    $region10: #{nnmodel_forward.1} parent=1 // pred_check
      _
    $region11: #{nnmodel_forward.1} parent=1 // pred_check_branch
      %36 = sbr.rel (0) target = $region13
    $region12: #{nnmodel_forward.1} parent=1 // pred_region
      %s38 = ssub.s32 3072, 3072
      %39 = vsyncadd [#allocation6], %s38
      %s40 = sshll.u32 [#allocation7], 4
      %s41 = int_to_ptr.vmem [resolvable:$true] %s40
      %46 = dma.hbm_to_vmem [thread:$0]  %s2, 3072, %s41, [#allocation6], 64, 64, 4
    $region13: #{nnmodel_forward.1} parent=1 // pred_fallthru
      _
    // Predicated region
    $region14: #{nnmodel_forward.1} parent=1 // pred_check
      _
    $region15: #{nnmodel_forward.1} parent=1 // pred_check_branch
      %48 = sbr.rel (0) target = $region17
    $region16: #{nnmodel_forward.1} parent=1 // pred_region
      _
    $region17: #{nnmodel_forward.1} parent=1 // pred_fallthru
      _
    // Predicated region
    $region18: #{nnmodel_forward.1} parent=1 // pred_check
      _
    $region19: #{nnmodel_forward.1} parent=1 // pred_check_branch
      %50 = sbr.rel (0) target = $region21
    $region20: #{nnmodel_forward.1} parent=1 // pred_region
      _
    $region21: #{nnmodel_forward.1} parent=1 // pred_fallthru
      _
    // Predicated region
    $region22: #{nnmodel_forward.1} parent=1 // pred_check
      _
    $region23: #{nnmodel_forward.1} parent=1 // pred_check_branch
      %52 = sbr.rel (0) target = $region25
    $region24: #{nnmodel_forward.1} parent=1 // pred_region
      %53 = dma.done [#allocation3], 128
    $region25: #{nnmodel_forward.1} parent=1 // pred_fallthru
      _
    // Predicated region
    $region26: #{nnmodel_forward.1} parent=1 // pred_check
      _
    $region27: #{nnmodel_forward.1} parent=1 // pred_check_branch
      %55 = sbr.rel (0) target = $region29
    $region28: #{nnmodel_forward.1} parent=1 // pred_region
      %56 = dma.done [#allocation6], 256
    $region29: #{nnmodel_forward.1} parent=1 // pred_fallthru
      _
    // Predicated region
    $region30: #{nnmodel_forward.1} parent=1 // pred_check
      _
    $region31: #{nnmodel_forward.1} parent=1 // pred_check_branch
      %58 = sbr.rel (0) target = $region33
    $region32: #{nnmodel_forward.1} parent=1 // pred_region
      %59 = dma.done [#allocation6], 3072
    $region33: #{nnmodel_forward.1} parent=1 // pred_fallthru
      _
    %v61 = vld [vmem:[#allocation2] sm:$0xff]
    %v62 = vpack.c.bf16 %v61, %v61
    %v63 = vld [vmem:[#allocation5] sm:$0xf]
    %v64 = vld [vmem:[#allocation5 + $0x4] sm:$0xf]
    %v65 = vld [vmem:[#allocation5 + $0x8] sm:$0xf]
    %v66 = vld [vmem:[#allocation5 + $0xc] sm:$0xf]
    %v67 = vld [vmem:[%s4] sm:$0x1]
    %v69 = vlaneseq
    %v70 = vshrl.u32 %v69, 7
    %v71 = vsub.s32 0, %v70
    %v72 = vrot.slane %v67, %v71
    %v78 = vunpack.c.l.b16 %v63
    %v79 = vunpack.c.l.b16 %v64
    %v80 = vunpack.c.l.b16 %v65
    %v81 = vunpack.c.l.b16 %v66
    %v82 = vpack.c.b16 %v79, %v78
    %v83 = vpack.c.b16 %v81, %v80
    %vm86 = vcmask 261120
    %v88 = vsel %vm86, %v62, 0
    %90 = vmatprep.subr.bf16.mxu0 0
    %91 = vmatpush1.bf16.msra.mxu0 %v82
    %92 = vmatprep.subr.bf16.mxu0 0
    %93 = vmatpush1.bf16.msra.mxu0 %v83
    %94 = vmatprep.subr.bf16.mxu0 0
    %95 = vmatpush1.bf16.msra.mxu0 0
    %96 = vmatprep.subr.bf16.mxu0 0
    %97 = vmatpush1.bf16.msra.mxu0 0
    %98 = vmatprep.subr.bf16.mxu0 0
    %99 = vmatpush1.bf16.msra.mxu0 0
    %100 = vmatprep.subr.bf16.mxu0 0
    %101 = vmatpush1.bf16.msra.mxu0 0
    %102 = vmatprep.subr.bf16.mxu0 0
    %103 = vmatpush1.bf16.msra.mxu0 0
    %104 = vmatprep.subr.bf16.mxu0 0
    %105 = vmatpush1.bf16.msra.mxu0 0
    %106 = vmatprep.subr.bf16.mxu0 0
    %107 = vmatpush1.bf16.msra.mxu0 0
    %108 = vmatprep.subr.bf16.mxu0 0
    %109 = vmatpush1.bf16.msra.mxu0 0
    %110 = vmatprep.subr.bf16.mxu0 0
    %111 = vmatpush1.bf16.msra.mxu0 0
    %112 = vmatprep.subr.bf16.mxu0 0
    %113 = vmatpush1.bf16.msra.mxu0 0
    %114 = vmatprep.subr.bf16.mxu0 0
    %115 = vmatpush1.bf16.msra.mxu0 0
    %116 = vmatprep.subr.bf16.mxu0 0
    %117 = vmatpush1.bf16.msra.mxu0 0
    %118 = vmatprep.subr.bf16.mxu0 0
    %119 = vmatpush1.bf16.msra.mxu0 0
    %120 = vmatprep.subr.bf16.mxu0 0
    %121 = vmatpush1.bf16.msra.mxu0 0
    %122 = vmatprep.mubr.bf16.mxu0 0
    %123 = vmatmul.mubr.bf16.gmra.mrb[0].mxu0 %v88
    %v124 = vpop.f32.mrb[0].mxu0
    %v125 = vadd.f32 %v72, %v124
    %v126 = vpop.f32.mrb[0].mxu0
    %v127 = vpop.f32.mrb[0].mxu0
    %v128 = vpop.f32.mrb[0].mxu0
    %129 = vdwg.mxu0
    %v130 = vmax.f32 %v125, 0.0
    %v131 = vpack.c.bf16 %v130, %v130
    %v132 = vld [vmem:[#allocation7] sm:$0xf]
    %v133 = vld [vmem:[#allocation7 + $0x4] sm:$0xf]
    %v134 = vld [vmem:[#allocation7 + $0x8] sm:$0xf]
    %v135 = vld [vmem:[#allocation7 + $0xc] sm:$0xf]
    %v136 = vld [vmem:[#allocation7 + $0x10] sm:$0xf]
    %v137 = vld [vmem:[#allocation7 + $0x14] sm:$0xf]
    %v138 = vld [vmem:[#allocation7 + $0x18] sm:$0xf]
    %v139 = vld [vmem:[#allocation7 + $0x1c] sm:$0xf]
    %v140 = vld [vmem:[#allocation7 + $0x20] sm:$0xf]
    %v141 = vld [vmem:[#allocation7 + $0x24] sm:$0xf]
    %v142 = vld [vmem:[#allocation7 + $0x28] sm:$0xf]
    %v143 = vld [vmem:[#allocation7 + $0x2c] sm:$0xf]
    %v144 = vld [vmem:[#allocation7 + $0x30] sm:$0xf]
    %v145 = vld [vmem:[#allocation7 + $0x34] sm:$0xf]
    %v146 = vld [vmem:[#allocation7 + $0x38] sm:$0xf]
    %v147 = vld [vmem:[#allocation7 + $0x3c] sm:$0xf]
    %s148 = scalar_lea.vmem %s4, 1
    %v149 = vld [vmem:[%s148] sm:$0x1]
    %v151 = vlaneseq
    %v152 = vshrl.u32 %v151, 7
    %v153 = vsub.s32 0, %v152
    %v154 = vrot.slane %v149, %v153
    %v172 = vunpack.c.l.b16 %v132
    %v173 = vunpack.c.l.b16 %v133
    %v174 = vunpack.c.l.b16 %v134
    %v175 = vunpack.c.l.b16 %v135
    %v176 = vunpack.c.l.b16 %v136
    %v177 = vunpack.c.l.b16 %v137
    %v178 = vunpack.c.l.b16 %v138
    %v179 = vunpack.c.l.b16 %v139
    %v180 = vunpack.c.l.b16 %v140
    %v181 = vunpack.c.l.b16 %v141
    %v182 = vunpack.c.l.b16 %v142
    %v183 = vunpack.c.l.b16 %v143
    %v184 = vunpack.c.l.b16 %v144
    %v185 = vunpack.c.l.b16 %v145
    %v186 = vunpack.c.l.b16 %v146
    %v187 = vunpack.c.l.b16 %v147
    %v188 = vpack.c.b16 %v173, %v172
    %v189 = vpack.c.b16 %v175, %v174
    %v190 = vpack.c.b16 %v177, %v176
    %v191 = vpack.c.b16 %v179, %v178
    %v192 = vpack.c.b16 %v181, %v180
    %v193 = vpack.c.b16 %v183, %v182
    %v194 = vpack.c.b16 %v185, %v184
    %v195 = vpack.c.b16 %v187, %v186
    %204 = vmatprep.subr.bf16.mxu0 0
    %205 = vmatpush1.bf16.msra.mxu0 %v188
    %206 = vmatprep.subr.bf16.mxu0 0
    %207 = vmatpush1.bf16.msra.mxu0 %v189
    %208 = vmatprep.subr.bf16.mxu0 0
    %209 = vmatpush1.bf16.msra.mxu0 %v190
    %210 = vmatprep.subr.bf16.mxu0 0
    %211 = vmatpush1.bf16.msra.mxu0 %v191
    %212 = vmatprep.subr.bf16.mxu0 0
    %213 = vmatpush1.bf16.msra.mxu0 %v192
    %214 = vmatprep.subr.bf16.mxu0 0
    %215 = vmatpush1.bf16.msra.mxu0 %v193
    %216 = vmatprep.subr.bf16.mxu0 0
    %217 = vmatpush1.bf16.msra.mxu0 %v194
    %218 = vmatprep.subr.bf16.mxu0 0
    %219 = vmatpush1.bf16.msra.mxu0 %v195
    %220 = vmatprep.subr.bf16.mxu0 0
    %221 = vmatpush1.bf16.msra.mxu0 0
    %222 = vmatprep.subr.bf16.mxu0 0
    %223 = vmatpush1.bf16.msra.mxu0 0
    %224 = vmatprep.subr.bf16.mxu0 0
    %225 = vmatpush1.bf16.msra.mxu0 0
    %226 = vmatprep.subr.bf16.mxu0 0
    %227 = vmatpush1.bf16.msra.mxu0 0
    %228 = vmatprep.subr.bf16.mxu0 0
    %229 = vmatpush1.bf16.msra.mxu0 0
    %230 = vmatprep.subr.bf16.mxu0 0
    %231 = vmatpush1.bf16.msra.mxu0 0
    %232 = vmatprep.subr.bf16.mxu0 0
    %233 = vmatpush1.bf16.msra.mxu0 0
    %234 = vmatprep.subr.bf16.mxu0 0
    %235 = vmatpush1.bf16.msra.mxu0 0
    %236 = vmatprep.mubr.bf16.mxu0 0
    %237 = vmatmul.mubr.bf16.gmra.mrb[0].mxu0 %v131
    %v238 = vpop.f32.mrb[0].mxu0
    %v239 = vadd.f32 %v154, %v238
    %v240 = vpop.f32.mrb[0].mxu0
    %v241 = vpop.f32.mrb[0].mxu0
    %v242 = vpop.f32.mrb[0].mxu0
    %243 = vdwg.mxu0
    %v244 = vmax.f32 %v239, 0.0
    %v245 = vpack.c.bf16 %v244, %v244
    %s246 = scalar_lea.vmem [#allocation7], 64
    %v247 = vld [vmem:[%s246] sm:$0xf]
    %v248 = vld [vmem:[%s246 + $0x4] sm:$0xf]
    %v249 = vld [vmem:[%s246 + $0x8] sm:$0xf]
    %v250 = vld [vmem:[%s246 + $0xc] sm:$0xf]
    %v251 = vld [vmem:[%s246 + $0x10] sm:$0xf]
    %v252 = vld [vmem:[%s246 + $0x14] sm:$0xf]
    %v253 = vld [vmem:[%s246 + $0x18] sm:$0xf]
    %v254 = vld [vmem:[%s246 + $0x1c] sm:$0xf]
    %v255 = vld [vmem:[%s246 + $0x20] sm:$0xf]
    %v256 = vld [vmem:[%s246 + $0x24] sm:$0xf]
    %v257 = vld [vmem:[%s246 + $0x28] sm:$0xf]
    %v258 = vld [vmem:[%s246 + $0x2c] sm:$0xf]
    %v259 = vld [vmem:[%s246 + $0x30] sm:$0xf]
    %v260 = vld [vmem:[%s246 + $0x34] sm:$0xf]
    %v261 = vld [vmem:[%s246 + $0x38] sm:$0xf]
    %v262 = vld [vmem:[%s246 + $0x3c] sm:$0xf]
    %s263 = scalar_lea.vmem %s4, 2
    %v264 = vld [vmem:[%s263] sm:$0x1]
    %v266 = vlaneseq
    %v267 = vshrl.u32 %v266, 7
    %v268 = vsub.s32 0, %v267
    %v269 = vrot.slane %v264, %v268
    %v287 = vunpack.c.l.b16 %v247
    %v288 = vunpack.c.l.b16 %v248
    %v289 = vunpack.c.l.b16 %v249
    %v290 = vunpack.c.l.b16 %v250
    %v291 = vunpack.c.l.b16 %v251
    %v292 = vunpack.c.l.b16 %v252
    %v293 = vunpack.c.l.b16 %v253
    %v294 = vunpack.c.l.b16 %v254
    %v295 = vunpack.c.l.b16 %v255
    %v296 = vunpack.c.l.b16 %v256
    %v297 = vunpack.c.l.b16 %v257
    %v298 = vunpack.c.l.b16 %v258
    %v299 = vunpack.c.l.b16 %v259
    %v300 = vunpack.c.l.b16 %v260
    %v301 = vunpack.c.l.b16 %v261
    %v302 = vunpack.c.l.b16 %v262
    %v303 = vpack.c.b16 %v288, %v287
    %v304 = vpack.c.b16 %v290, %v289
    %v305 = vpack.c.b16 %v292, %v291
    %v306 = vpack.c.b16 %v294, %v293
    %v307 = vpack.c.b16 %v296, %v295
    %v308 = vpack.c.b16 %v298, %v297
    %v309 = vpack.c.b16 %v300, %v299
    %v310 = vpack.c.b16 %v302, %v301
    %319 = vmatprep.subr.bf16.mxu0 0
    %320 = vmatpush1.bf16.msra.mxu0 %v303
    %321 = vmatprep.subr.bf16.mxu0 0
    %322 = vmatpush1.bf16.msra.mxu0 %v304
    %323 = vmatprep.subr.bf16.mxu0 0
    %324 = vmatpush1.bf16.msra.mxu0 %v305
    %325 = vmatprep.subr.bf16.mxu0 0
    %326 = vmatpush1.bf16.msra.mxu0 %v306
    %327 = vmatprep.subr.bf16.mxu0 0
    %328 = vmatpush1.bf16.msra.mxu0 %v307
    %329 = vmatprep.subr.bf16.mxu0 0
    %330 = vmatpush1.bf16.msra.mxu0 %v308
    %331 = vmatprep.subr.bf16.mxu0 0
    %332 = vmatpush1.bf16.msra.mxu0 %v309
    %333 = vmatprep.subr.bf16.mxu0 0
    %334 = vmatpush1.bf16.msra.mxu0 %v310
    %335 = vmatprep.subr.bf16.mxu0 0
    %336 = vmatpush1.bf16.msra.mxu0 0
    %337 = vmatprep.subr.bf16.mxu0 0
    %338 = vmatpush1.bf16.msra.mxu0 0
    %339 = vmatprep.subr.bf16.mxu0 0
    %340 = vmatpush1.bf16.msra.mxu0 0
    %341 = vmatprep.subr.bf16.mxu0 0
    %342 = vmatpush1.bf16.msra.mxu0 0
    %343 = vmatprep.subr.bf16.mxu0 0
    %344 = vmatpush1.bf16.msra.mxu0 0
    %345 = vmatprep.subr.bf16.mxu0 0
    %346 = vmatpush1.bf16.msra.mxu0 0
    %347 = vmatprep.subr.bf16.mxu0 0
    %348 = vmatpush1.bf16.msra.mxu0 0
    %349 = vmatprep.subr.bf16.mxu0 0
    %350 = vmatpush1.bf16.msra.mxu0 0
    %351 = vmatprep.mubr.bf16.mxu0 0
    %352 = vmatmul.mubr.bf16.gmra.mrb[0].mxu0 %v245
    %v353 = vpop.f32.mrb[0].mxu0
    %v354 = vadd.f32 %v269, %v353
    %v355 = vpop.f32.mrb[0].mxu0
    %v356 = vpop.f32.mrb[0].mxu0
    %v357 = vpop.f32.mrb[0].mxu0
    %358 = vdwg.mxu0
    %v359 = vmax.f32 %v354, 0.0
    %v360 = vpack.c.bf16 %v359, %v359
    %s361 = scalar_lea.vmem [#allocation7], 128
    %v362 = vld [vmem:[%s361] sm:$0xf]
    %v363 = vld [vmem:[%s361 + $0x4] sm:$0xf]
    %v364 = vld [vmem:[%s361 + $0x8] sm:$0xf]
    %v365 = vld [vmem:[%s361 + $0xc] sm:$0xf]
    %v366 = vld [vmem:[%s361 + $0x10] sm:$0xf]
    %v367 = vld [vmem:[%s361 + $0x14] sm:$0xf]
    %v368 = vld [vmem:[%s361 + $0x18] sm:$0xf]
    %v369 = vld [vmem:[%s361 + $0x1c] sm:$0xf]
    %v370 = vld [vmem:[%s361 + $0x20] sm:$0xf]
    %v371 = vld [vmem:[%s361 + $0x24] sm:$0xf]
    %v372 = vld [vmem:[%s361 + $0x28] sm:$0xf]
    %v373 = vld [vmem:[%s361 + $0x2c] sm:$0xf]
    %v374 = vld [vmem:[%s361 + $0x30] sm:$0xf]
    %v375 = vld [vmem:[%s361 + $0x34] sm:$0xf]
    %v376 = vld [vmem:[%s361 + $0x38] sm:$0xf]
    %v377 = vld [vmem:[%s361 + $0x3c] sm:$0xf]
    %s378 = scalar_lea.vmem %s4, 3
    %v379 = vld [vmem:[%s378] sm:$0x1]
    %v381 = vlaneseq
    %v382 = vshrl.u32 %v381, 7
    %v383 = vsub.s32 0, %v382
    %v384 = vrot.slane %v379, %v383
    %v402 = vunpack.c.l.b16 %v362
    %v403 = vunpack.c.l.b16 %v363
    %v404 = vunpack.c.l.b16 %v364
    %v405 = vunpack.c.l.b16 %v365
    %v406 = vunpack.c.l.b16 %v366
    %v407 = vunpack.c.l.b16 %v367
    %v408 = vunpack.c.l.b16 %v368
    %v409 = vunpack.c.l.b16 %v369
    %v410 = vunpack.c.l.b16 %v370
    %v411 = vunpack.c.l.b16 %v371
    %v412 = vunpack.c.l.b16 %v372
    %v413 = vunpack.c.l.b16 %v373
    %v414 = vunpack.c.l.b16 %v374
    %v415 = vunpack.c.l.b16 %v375
    %v416 = vunpack.c.l.b16 %v376
    %v417 = vunpack.c.l.b16 %v377
    %v418 = vpack.c.b16 %v403, %v402
    %v419 = vpack.c.b16 %v405, %v404
    %v420 = vpack.c.b16 %v407, %v406
    %v421 = vpack.c.b16 %v409, %v408
    %v422 = vpack.c.b16 %v411, %v410
    %v423 = vpack.c.b16 %v413, %v412
    %v424 = vpack.c.b16 %v415, %v414
    %v425 = vpack.c.b16 %v417, %v416
    %434 = vmatprep.subr.bf16.mxu0 0
    %435 = vmatpush1.bf16.msra.mxu0 %v418
    %436 = vmatprep.subr.bf16.mxu0 0
    %437 = vmatpush1.bf16.msra.mxu0 %v419
    %438 = vmatprep.subr.bf16.mxu0 0
    %439 = vmatpush1.bf16.msra.mxu0 %v420
    %440 = vmatprep.subr.bf16.mxu0 0
    %441 = vmatpush1.bf16.msra.mxu0 %v421
    %442 = vmatprep.subr.bf16.mxu0 0
    %443 = vmatpush1.bf16.msra.mxu0 %v422
    %444 = vmatprep.subr.bf16.mxu0 0
    %445 = vmatpush1.bf16.msra.mxu0 %v423
    %446 = vmatprep.subr.bf16.mxu0 0
    %447 = vmatpush1.bf16.msra.mxu0 %v424
    %448 = vmatprep.subr.bf16.mxu0 0
    %449 = vmatpush1.bf16.msra.mxu0 %v425
    %450 = vmatprep.subr.bf16.mxu0 0
    %451 = vmatpush1.bf16.msra.mxu0 0
    %452 = vmatprep.subr.bf16.mxu0 0
    %453 = vmatpush1.bf16.msra.mxu0 0
    %454 = vmatprep.subr.bf16.mxu0 0
    %455 = vmatpush1.bf16.msra.mxu0 0
    %456 = vmatprep.subr.bf16.mxu0 0
    %457 = vmatpush1.bf16.msra.mxu0 0
    %458 = vmatprep.subr.bf16.mxu0 0
    %459 = vmatpush1.bf16.msra.mxu0 0
    %460 = vmatprep.subr.bf16.mxu0 0
    %461 = vmatpush1.bf16.msra.mxu0 0
    %462 = vmatprep.subr.bf16.mxu0 0
    %463 = vmatpush1.bf16.msra.mxu0 0
    %464 = vmatprep.subr.bf16.mxu0 0
    %465 = vmatpush1.bf16.msra.mxu0 0
    %466 = vmatprep.mubr.bf16.mxu0 0
    %467 = vmatmul.mubr.bf16.gmra.mrb[0].mxu0 %v360
    %v468 = vpop.f32.mrb[0].mxu0
    %v469 = vadd.f32 %v384, %v468
    %v470 = vpop.f32.mrb[0].mxu0
    %v471 = vpop.f32.mrb[0].mxu0
    %v472 = vpop.f32.mrb[0].mxu0
    %473 = vdwg.mxu0
    %v474 = vmax.f32 %v469, 0.0
    %v475 = vpack.c.bf16 %v474, %v474
    %v476 = vld [vmem:[%s3] sm:$0xf]
    %477 = vmatprep.subr.bf16.mxu0 0
    %478 = vmatpush1.bf16.xpose.msra.mxu0 %v475
    %479 = vmatprep.subr.bf16.mxu0 0
    %480 = vmatpush1.bf16.xpose.msra.mxu0 0
    %481 = vmatprep.subr.bf16.mxu0 0
    %482 = vmatpush1.bf16.xpose.msra.mxu0 0
    %483 = vmatprep.subr.bf16.mxu0 0
    %484 = vmatpush1.bf16.xpose.msra.mxu0 0
    %485 = vmatprep.subr.bf16.mxu0 0
    %486 = vmatpush1.bf16.xpose.msra.mxu0 0
    %487 = vmatprep.subr.bf16.mxu0 0
    %488 = vmatpush1.bf16.xpose.msra.mxu0 0
    %489 = vmatprep.subr.bf16.mxu0 0
    %490 = vmatpush1.bf16.xpose.msra.mxu0 0
    %491 = vmatprep.subr.bf16.mxu0 0
    %492 = vmatpush1.bf16.xpose.msra.mxu0 0
    %493 = vmatprep.subr.bf16.mxu0 0
    %494 = vmatpush1.bf16.xpose.msra.mxu0 0
    %495 = vmatprep.subr.bf16.mxu0 0
    %496 = vmatpush1.bf16.xpose.msra.mxu0 0
    %497 = vmatprep.subr.bf16.mxu0 0
    %498 = vmatpush1.bf16.xpose.msra.mxu0 0
    %499 = vmatprep.subr.bf16.mxu0 0
    %500 = vmatpush1.bf16.xpose.msra.mxu0 0
    %501 = vmatprep.subr.bf16.mxu0 0
    %502 = vmatpush1.bf16.xpose.msra.mxu0 0
    %503 = vmatprep.subr.bf16.mxu0 0
    %504 = vmatpush1.bf16.xpose.msra.mxu0 0
    %505 = vmatprep.subr.bf16.mxu0 0
    %506 = vmatpush1.bf16.xpose.msra.mxu0 0
    %507 = vmatprep.subr.bf16.mxu0 0
    %508 = vmatpush1.bf16.xpose.msra.mxu0 0
    %509 = vmatprep.mubr.bf16.mxu0 0
    %510 = vmatmul.mubr.bf16.gmra.mrb[0].mxu0 %v476
    %v511 = vpop.f32.mrb[0].mxu0
    %v512 = vadd.f32 0.0, %v511
    %v513 = vpop.f32.mrb[0].mxu0
    %v514 = vpop.f32.mrb[0].mxu0
    %v515 = vpop.f32.mrb[0].mxu0
    %516 = vdwg.mxu0
    %s517 = scalar_lea.vmem %s4, 4
    %v518 = vld [vmem:[%s517] sm:$0x1]
    %520 = vset.pattern.permute.xlu0 0
    %521 = vperm.xlu0 %520, %v518
    %v522 = vpop.permute.xlu0 %521
    %v524 = vlaneseq
    %v525 = vshrl.u32 %v524, 7
    %v526 = vsub.s32 0, %v525
    %v527 = vrot.slane %v522, %v526
    %v528 = vadd.f32 %v512, %v527
    %v529 = vxor.u32 %v528, 2147483648
    %v530 = vmul.f32 %v529, 1.442695
    %v531 = vpow.pop %v530
    %v532 = vadd.f32 %v531, 1.0
    %v533 = vrcp.pop %v532
    %v534 = vmul.f32 1.0, %v533
    %vm535 = vcmask 57344
    %536 = vst.msk [vmem:[#allocation8] sm:$0x1] %vm535, %v534
    // Predicated region
    $region34: #{nnmodel_forward.1} parent=1 // pred_check
      _
    $region35: #{nnmodel_forward.1} parent=1 // pred_check_branch
      %538 = sbr.rel (0) target = $region37
    $region36: #{nnmodel_forward.1} parent=1 // pred_region
      %s540 = ssub.s32 16, 16
      %541 = vsyncadd [#allocation4], %s540
      %s543 = sshll.u32 [#allocation8], 4
      %s544 = int_to_ptr.vmem [resolvable:$true] %s543
      %546 = dma.vmem_to_hbm [thread:$0]  %s544, 16, %s5, [#allocation4]
    $region37: #{nnmodel_forward.1} parent=1 // pred_fallthru
      _
    // Predicated region
    $region38: #{nnmodel_forward.1} parent=1 // pred_check
      _
    $region39: #{nnmodel_forward.1} parent=1 // pred_check_branch
      %548 = sbr.rel (0) target = $region41
    $region40: #{nnmodel_forward.1} parent=1 // pred_region
      %549 = dma.done [#allocation4], 16
    $region41: #{nnmodel_forward.1} parent=1 // pred_fallthru
      _
    %550 = vsyncpa [#allocation3], 1
    %551 = vsyncpa [#allocation6], 1
    %552 = vsyncpa [#allocation4], 1

</llo_original>
